<compile_context>
chip_gen: v7x
topology: tpu7x:2x2x1
jax: 0.10.0
libtpu: 0.0.40
codegen_flags: <defaults>
</compile_context>

<pallas_src>
import math
import functools

import numpy as np
import jax
import jax.numpy as jnp
from jax.experimental import pallas as pl
from jax.experimental.pallas import tpu as pltpu

RGB_PAD = 128          # ToRGB outputs padded 3 -> 128 so rgb stores are lane-dense
SQRT2 = math.sqrt(2.0)


# ----------------------------- Pallas kernels -----------------------------

def style_mlp_kernel(z_ref, w_ref, b_ref, out_ref, *, n_mlp, lr_mul):
    """PixelNorm + n_mlp x EqualLinear(lr_mul, activation='fused_lrelu')."""
    x = z_ref[...].astype(jnp.float32)                                      # (B, S)
    x = x * jax.lax.rsqrt(jnp.mean(x * x, axis=1, keepdims=True) + 1e-8)    # PixelNorm
    S = x.shape[1]
    scale = (1.0 / math.sqrt(S)) * lr_mul
    for l in range(n_mlp):
        w = w_ref[l]                               # (S, S), stored [in, out] (= torch W.T)
        b = b_ref[pl.ds(l, 1), :]                  # (1, S)
        y = jnp.dot(x, w, preferred_element_type=jnp.float32) * scale + b * lr_mul
        x = jnp.maximum(y, 0.2 * y) * SQRT2                                  # fused_leaky_relu
    out_ref[...] = x


def modulate_kernel(lat_ref, modw_ref, modb_ref, convwt_ref, out_ref, *,
                    mod_scale, conv_scale, demodulate, post_scale):
    """Per-layer modulated (+demodulated) 1x1-conv weights for ALL batch items,
    emitted directly in MXU-natural [Cin, Cout] bf16 layout.
      lat (S, B) ; modw (1, Cin, S) ; modb (1, Cin, 1) ; convwt (1, Cin, Cout)
      out (1, B, Cin, Cout) bf16."""
    B = lat_ref.shape[1]
    cin = convwt_ref.shape[1]
    # per-input-channel style scale, column layout (Cin, B)
    s_t = jnp.dot(modw_ref[0], lat_ref[...],
                  preferred_element_type=jnp.float32) * mod_scale + modb_ref[0]
    wt = convwt_ref[0] * conv_scale                                          # (Cin, Cout) f32
    ones_row = jnp.ones((1, cin), jnp.float32)
    for b in range(B):                                                       # B is small & static
        wb = wt * s_t[:, b:b + 1]                                            # modulate (row scale)
        if demodulate:
            # sum over Cin via a tiny M=1 matmul (bulletproof sublane reduction)
            d = jax.lax.rsqrt(jnp.dot(ones_row, wb * wb,
                                      preferred_element_type=jnp.float32) + 1e-8)  # (1, Cout)
            wb = wb * d                                                      # demodulate (col scale)
        if post_scale != 1.0:
            wb = wb * post_scale                                             # folded lrelu sqrt(2)
        out_ref[0, b] = wb.astype(out_ref.dtype)


def fused_stack_kernel(coords_ref, emb_ref, lffw_ref, lffb_ref,
                       w1_ref, b1_ref, wlin_ref, blin_ref, wrgb_ref, brgb_ref,
                       rgb_ref):
    """LFF + conv1 + (StyledConv x2 -> ToRGB accumulate) x n_intermediate for one
    (batch, pixel-tile) grid cell. Activations stay resident in VMEM/vregs."""
    hidden = emb_ref.shape[2]
    n_rgb = wrgb_ref.shape[0]

    # --- LFF: 1x1 conv (2 -> hidden) as two VPU FMAs, then sin --------------
    c = coords_ref[0]                                                        # (Pt, 2) f32
    lffw = lffw_ref[...]                                                     # (2, hidden) f32
    lff = jnp.sin(c[:, 0:1] * lffw[0:1, :] + c[:, 1:2] * lffw[1:2, :] + lffb_ref[...])

    # --- conv1: concat([lff, emb]) @ W == lff @ W[:h] + emb @ W[h:] ---------
    w1 = w1_ref[0, 0]                                                        # (2*hidden, CH) bf16
    y = jnp.dot(lff.astype(jnp.bfloat16), w1[:hidden, :],
                preferred_element_type=jnp.float32)
    y = y + jnp.dot(emb_ref[0], w1[hidden:, :], preferred_element_type=jnp.float32)
    x = y.astype(jnp.bfloat16) + b1_ref[...]                                 # bf16 epilogue
    x = jnp.maximum(x, 0.2 * x)                                              # sqrt2 folded in weights

    # --- intermediate StyledConvs + ToRGB skip accumulation (unrolled) ------
    rgb = None
    for i in range(n_rgb):
        for j in range(2):                                                   # to_rgb_stride = 2
            l = 2 * i + j
            y = jnp.dot(x, wlin_ref[l, 0], preferred_element_type=jnp.float32)
            x = y.astype(jnp.bfloat16) + blin_ref[l]
            x = jnp.maximum(x, 0.2 * x)
        r = jnp.dot(x, wrgb_ref[i, 0], preferred_element_type=jnp.float32)   # ToRGB (no demod)
        rgb = r if rgb is None else rgb + r                                  # f32 skip add in VMEM
    rgb_ref[0] = (rgb + brgb_ref[...]).astype(rgb_ref.dtype)                 # one lane-dense bf16 store


# ----------------------------- wrappers -----------------------------

def modulate_weights(lat_t, mod_w, mod_b, conv_w_t, *, demodulate, post_scale):
    """Per-(layer, batch) modulated weights, emitted as bf16 [L, B, Cin, Cout]."""
    S, B = lat_t.shape
    L, cin, _ = mod_w.shape
    cout = conv_w_t.shape[2]
    return pl.pallas_call(
        functools.partial(modulate_kernel,
                          mod_scale=1.0 / math.sqrt(S),
                          conv_scale=1.0 / math.sqrt(cin),
                          demodulate=demodulate,
                          post_scale=post_scale),
        out_shape=jax.ShapeDtypeStruct((L, B, cin, cout), jnp.bfloat16),
        grid=(L,),
        in_specs=[
            pl.BlockSpec((S, B), lambda l: (0, 0)),              # latent.T (shared over layers)
            pl.BlockSpec((1, cin, S), lambda l: (l, 0, 0)),      # modulation weight (torch [Cin,S])
            pl.BlockSpec((1, cin, 1), lambda l: (l, 0, 0)),      # modulation bias (init 1)
            pl.BlockSpec((1, cin, cout), lambda l: (l, 0, 0)),   # conv weight, pre-transposed [Cin,Cout]
        ],
        out_specs=pl.BlockSpec((1, B, cin, cout), lambda l: (l, 0, 0, 0)),
        compiler_params=pltpu.CompilerParams(
            dimension_semantics=("parallel",),
            vmem_limit_bytes=48 * 1024 * 1024),
    )(lat_t, mod_w, mod_b, conv_w_t)


def fused_generator(coords_flat, emb_flat, lff_w, lff_b,
                    w1, b1, wlin, blin, wrgb, brgb_sum, *, p_tile, vmem_limit):
    B, P, _ = coords_flat.shape
    hidden = emb_flat.shape[2]
    two_h, CH = w1.shape[2], w1.shape[3]
    n_lin = wlin.shape[0]
    n_rgb = wrgb.shape[0]
    assert P % p_tile == 0
    T = P // p_tile
    return pl.pallas_call(
        fused_stack_kernel,
        out_shape=jax.ShapeDtypeStruct((B, P, RGB_PAD), jnp.bfloat16),
        grid=(B, T),                                   # pixel-tile axis innermost: per-batch
        in_specs=[                                     # weights are DMA'd once per batch item
            pl.BlockSpec((1, p_tile, 2), lambda b, t: (b, t, 0)),             # coords (per batch)
            pl.BlockSpec((1, p_tile, hidden), lambda b, t: (0, t, 0)),        # emb (shared over B)
            pl.BlockSpec((2, hidden), lambda b, t: (0, 0)),                   # lff weight
            pl.BlockSpec((1, hidden), lambda b, t: (0, 0)),                   # lff bias
            pl.BlockSpec((1, 1, two_h, CH), lambda b, t: (0, b, 0, 0)),       # conv1 weight bf16 [Cin,Cout]
            pl.BlockSpec((1, CH), lambda b, t: (0, 0)),                       # conv1 bias (bf16)
            pl.BlockSpec((n_lin, 1, CH, CH), lambda b, t: (0, b, 0, 0)),      # linear weights
            pl.BlockSpec((n_lin, 1, CH), lambda b, t: (0, 0, 0)),             # linear biases (bf16)
            pl.BlockSpec((n_rgb, 1, CH, RGB_PAD), lambda b, t: (0, b, 0, 0)), # to_rgb weights
            pl.BlockSpec((1, RGB_PAD), lambda b, t: (0, 0)),                  # pre-summed to_rgb bias
        ],
        out_specs=pl.BlockSpec((1, p_tile, RGB_PAD), lambda b, t: (b, t, 0)),
        compiler_params=pltpu.CompilerParams(
            dimension_semantics=("parallel", "parallel"),
            vmem_limit_bytes=vmem_limit),
    )(coords_flat, emb_flat, lff_w, lff_b, w1, b1, wlin, blin, wrgb, brgb_sum)


def _choose_p_tile(P, cap):
    """Largest divisor of P that is a multiple of 16 and <= cap (fallback: full P)."""
    cands = [t for t in range(16, min(P, cap) + 1, 16) if P % t == 0]
    return max(cands) if cands else P


def _vmem_budget():
    """(p_tile cap, vmem_limit_bytes) per TPU generation."""
    try:
        vmem_cap = pltpu.get_tpu_info().vmem_capacity_bytes
    except Exception:
        vmem_cap = 64 * 1024 * 1024
    if vmem_cap >= 96 * 1024 * 1024:               # v5e / v6e: 128 MiB physical VMEM
        return 4096, 96 * 1024 * 1024
    return 2048, 48 * 1024 * 1024                  # v7x (64 MiB) / unknown: stay conservative


def cips_forward(coords, latent_in, params, cfg):
    B, _, H, W = coords.shape
    P = H * W
    hidden, S = cfg["hidden_size"], cfg["style_dim"]
    z = latent_in[0]                                    # latent = latent[0]

    # 1) mapping network
    wlat = pl.pallas_call(
        functools.partial(style_mlp_kernel, n_mlp=cfg["n_mlp"], lr_mul=cfg["lr_mlp"]),
        out_shape=jax.ShapeDtypeStruct((B, S), jnp.float32),
    )(z, params["style_w"], params["style_b"])
    lat_t = wlat.T                                      # (S, B) column layout for modulation

    # 2) per-(layer, batch) modulated weights, bf16 [Cin, Cout], hoisted out of the pixel loop.
    #    sqrt(2) lrelu gain of the *previous* activation is folded into wlin / wrgb (post-demod).
    w1 = modulate_weights(lat_t, params["conv1_mod_w"], params["conv1_mod_b"],
                          params["conv1_w"], demodulate=True, post_scale=1.0)     # (1,  B, 2h, CH)
    wlin = modulate_weights(lat_t, params["lin_mod_w"], params["lin_mod_b"],
                            params["lin_w"], demodulate=True, post_scale=SQRT2)   # (2n, B, CH, CH)
    wrgb = modulate_weights(lat_t, params["rgb_mod_w"], params["rgb_mod_b"],
                            params["rgb_w"], demodulate=False, post_scale=SQRT2)  # (n,  B, CH, 128)

    # 3) fused per-pixel pipeline, channels-last [B, P, C]
    coords_flat = jnp.transpose(coords, (0, 2, 3, 1)).reshape(B, P, 2)
    emb_flat = jnp.transpose(params["emb3"], (0, 2, 3, 1)).reshape(1, P, hidden)
    emb_flat = emb_flat.astype(jnp.bfloat16)
    b1 = params["conv1_bias"].astype(jnp.bfloat16)
    blin = params["lin_bias"].astype(jnp.bfloat16)
    brgb_sum = jnp.sum(params["rgb_bias"], axis=0)      # (1, RGB_PAD) f32, skip biases folded once

    p_tile_cap, vmem_limit = _vmem_budget()
    p_tile = _choose_p_tile(P, p_tile_cap)
    rgb_pad = fused_generator(coords_flat, emb_flat,
                              params["lff_w"], params["lff_b"],
                              w1, b1, wlin, blin, wrgb, brgb_sum,
                              p_tile=p_tile, vmem_limit=vmem_limit)               # (B, P, 128) bf16

    rgb = jnp.transpose(rgb_pad[..., :3].astype(jnp.float32).reshape(B, H, W, 3), (0, 3, 1, 2))
    return rgb, None


# ------------------- pure-JAX reference (mirrors the kernel's bf16 casts) -------------------

def _ref_modulated_weights(wlat, mod_w, mod_b, conv_w_t, demodulate, post_scale):
    S = wlat.shape[1]
    cin = conv_w_t.shape[1]
    s = jnp.einsum("bs,lcs->lbc", wlat, mod_w) * (1.0 / math.sqrt(S)) + mod_b[:, None, :, 0]
    w = conv_w_t[:, None, :, :] * (1.0 / math.sqrt(cin)) * s[:, :, :, None]       # (L,B,Cin,Cout)
    if demodulate:
        w = w * jax.lax.rsqrt(jnp.sum(w * w, axis=2, keepdims=True) + 1e-8)
    return (w * post_scale).astype(jnp.bfloat16)


def ref_forward(coords, latent_in, params, cfg):
    B, _, H, W = coords.shape
    P = H * W
    hidden, S = cfg["hidden_size"], cfg["style_dim"]
    n_int = cfg["n_intermediate"]
    z = latent_in[0]

    x = z * jax.lax.rsqrt(jnp.mean(z * z, axis=1, keepdims=True) + 1e-8)
    lr = cfg["lr_mlp"]
    scale = lr / math.sqrt(S)
    for l in range(cfg["n_mlp"]):
        y = (x @ params["style_w"][l]) * scale + params["style_b"][l] * lr
        x = jnp.maximum(y, 0.2 * y) * SQRT2
    wlat = x

    w1 = _ref_modulated_weights(wlat, params["conv1_mod_w"], params["conv1_mod_b"],
                                params["conv1_w"], True, 1.0)
    wlin = _ref_modulated_weights(wlat, params["lin_mod_w"], params["lin_mod_b"],
                                  params["lin_w"], True, SQRT2)
    wrgb = _ref_modulated_weights(wlat, params["rgb_mod_w"], params["rgb_mod_b"],
                                  params["rgb_w"], False, SQRT2)

    cf = jnp.transpose(coords, (0, 2, 3, 1)).reshape(B, P, 2)
    lw, lb = params["lff_w"], params["lff_b"]
    lff = jnp.sin(cf[..., 0:1] * lw[0:1, :] + cf[..., 1:2] * lw[1:2, :] + lb)
    emb = jnp.broadcast_to(
        jnp.transpose(params["emb3"], (0, 2, 3, 1)).reshape(1, P, hidden),
        (B, P, hidden)).astype(jnp.bfloat16)

    def mm(a, w):   # bf16 matmul with f32 accumulation (matches the kernel)
        return jnp.einsum("bpi,bio->bpo", a.astype(jnp.bfloat16), w,
                          preferred_element_type=jnp.float32)

    b1 = params["conv1_bias"].astype(jnp.bfloat16)
    blin = params["lin_bias"].astype(jnp.bfloat16)

    y = mm(lff, w1[0, :, :hidden, :]) + mm(emb, w1[0, :, hidden:, :])
    feat = y.astype(jnp.bfloat16) + b1
    feat = jnp.maximum(feat, 0.2 * feat)

    rgb = jnp.zeros((B, P, RGB_PAD), jnp.float32)
    for i in range(n_int):
        for j in range(2):
            l = 2 * i + j
            y = mm(feat, wlin[l])
            feat = y.astype(jnp.bfloat16) + blin[l]
            feat = jnp.maximum(feat, 0.2 * feat)
        rgb = rgb + mm(feat, wrgb[i])
    rgb = (rgb + jnp.sum(params["rgb_bias"], axis=0)).astype(jnp.bfloat16)
    return jnp.transpose(rgb[..., :3].astype(jnp.float32).reshape(B, H, W, 3), (0, 3, 1, 2)), None


# ----------------------------- parameters -----------------------------

def init_params(key, cfg):
    """Conv / linear weights are stored transposed to [in, out] (torch checkpoints would be W.T)."""
    hidden, S, size, CH = cfg["hidden_size"], cfg["style_dim"], cfg["size"], cfg["channel"]
    n_int = cfg["n_intermediate"]
    n_lin = 2 * n_int
    keys = iter(jax.random.split(key, 32))
    p = {}
    # LFF (ConLinear 2 -> hidden)
    p["lff_w"] = jax.random.normal(next(keys), (2, hidden), jnp.float32) / math.sqrt(2.0)
    p["lff_b"] = jax.random.normal(next(keys), (1, hidden), jnp.float32) * 0.1
    # ConstantInput emb3: (1, hidden, size, size)
    p["emb3"] = jax.random.normal(next(keys), (1, hidden, size, size), jnp.float32)
    # style mapping: n_mlp EqualLinear(S -> S), stored [in, out]
    p["style_w"] = jax.random.normal(next(keys), (cfg["n_mlp"], S, S), jnp.float32)
    p["style_b"] = jax.random.normal(next(keys), (cfg["n_mlp"], S), jnp.float32) * 0.1
    # conv1 (2*hidden -> CH), demodulated; modulation in torch layout [Cin, S]
    p["conv1_mod_w"] = jax.random.normal(next(keys), (1, 2 * hidden, S), jnp.float32)
    p["conv1_mod_b"] = jnp.ones((1, 2 * hidden, 1), jnp.float32)            # EqualLinear bias_init=1
    p["conv1_w"] = jax.random.normal(next(keys), (1, 2 * hidden, CH), jnp.float32)
    p["conv1_bias"] = jax.random.normal(next(keys), (1, CH), jnp.float32) * 0.1
    # intermediate StyledConvs (CH -> CH), demodulated
    p["lin_mod_w"] = jax.random.normal(next(keys), (n_lin, CH, S), jnp.float32)
    p["lin_mod_b"] = jnp.ones((n_lin, CH, 1), jnp.float32)
    p["lin_w"] = jax.random.normal(next(keys), (n_lin, CH, CH), jnp.float32)
    p["lin_bias"] = jax.random.normal(next(keys), (n_lin, 1, CH), jnp.float32) * 0.1
    # ToRGBs (CH -> 3), no demod; Cout zero-padded to RGB_PAD for lane-dense stores
    p["rgb_mod_w"] = jax.random.normal(next(keys), (n_int, CH, S), jnp.float32)
    p["rgb_mod_b"] = jnp.ones((n_int, CH, 1), jnp.float32)
    rgb_w3 = jax.random.normal(next(keys), (n_int, CH, 3), jnp.float32)
    p["rgb_w"] = jnp.zeros((n_int, CH, RGB_PAD), jnp.float32).at[:, :, :3].set(rgb_w3)
    rgb_b3 = jax.random.normal(next(keys), (n_int, 1, 3), jnp.float32) * 0.1
    p["rgb_bias"] = jnp.zeros((n_int, 1, RGB_PAD), jnp.float32).at[:, :, :3].set(rgb_b3)
    return p


# ----------------------------- main -----------------------------

if __name__ == "__main__":
    size = 16
    cfg = dict(
        size=size,
        hidden_size=32,
        style_dim=32,
        n_mlp=2,
        lr_mlp=0.01,
        channel=128,                              # lane/MXU-friendly stand-in for the 512-ch dict
        n_intermediate=int(math.log2(size)) - 1,  # log_size - 1
    )
    B = 2
    key = jax.random.PRNGKey(0)
    kp, kl = jax.random.split(key)
    params = init_params(kp, cfg)

    # coordinate grid in [-1, 1], NCHW: (B, 2, H, W)
    H = W = size
    xs = jnp.linspace(-1.0, 1.0, W)
    ys = jnp.linspace(-1.0, 1.0, H)
    gy, gx = jnp.meshgrid(ys, xs, indexing="ij")
    coords = jnp.broadcast_to(jnp.stack([gx, gy], axis=0)[None], (B, 2, H, W)).astype(jnp.float32)
    latent = jax.random.normal(kl, (B, cfg["style_dim"]), jnp.float32)

    rgb, _ = cips_forward(coords, [latent], params, cfg)
    rgb = jax.block_until_ready(rgb)
    assert rgb.shape == (B, 3, H, W), rgb.shape

    rgb_ref, _ = ref_forward(coords, [latent], params, cfg)
    np.testing.assert_allclose(np.asarray(rgb), np.asarray(rgb_ref), rtol=2e-2, atol=2e-2)

    print("KERNEL_OK")
</pallas_src>

<mosaic_0001>
module attributes {stable_mosaic.version = 11 : i64} {
  func.func @style_mlp_kernel(%arg0: memref<2x32xf32, #tpu.memory_space<vmem>>, %arg1: memref<2x32x32xf32, #tpu.memory_space<vmem>>, %arg2: memref<2x32xf32, #tpu.memory_space<vmem>>, %arg3: memref<2x32xf32, #tpu.memory_space<vmem>>) attributes {dimension_semantics = [], scalar_prefetch = 0 : i64, scratch_operands = 0 : i64, tpu.core_type = #tpu.core_type<tc>} {
    %c0 = arith.constant 0 : index
    %c0_0 = arith.constant 0 : index
    %0 = vector.load %arg0[%c0, %c0_0] : memref<2x32xf32, #tpu.memory_space<vmem>>, vector<2x32xf32>
    %1 = arith.mulf %0, %0 : vector<2x32xf32>
    %cst = arith.constant dense<0.000000e+00> : vector<2xf32>
    %2 = vector.multi_reduction <add>, %1, %cst [1] : vector<2x32xf32> to vector<2xf32>
    %3 = vector.shape_cast %2 : vector<2xf32> to vector<2x1xf32>
    %cst_1 = arith.constant 3.200000e+01 : f32
    %4 = vector.broadcast %cst_1 : f32 to vector<2x1xf32>
    %5 = arith.divf %3, %4 : vector<2x1xf32>
    %cst_2 = arith.constant 9.99999993E-9 : f32
    %6 = vector.broadcast %cst_2 : f32 to vector<2x1xf32>
    %7 = arith.addf %5, %6 : vector<2x1xf32>
    %8 = math.rsqrt %7 : vector<2x1xf32>
    %9 = vector.broadcast %8 : vector<2x1xf32> to vector<2x32xf32>
    %10 = arith.mulf %0, %9 : vector<2x32xf32>
    %c0_3 = arith.constant 0 : index
    %c0_4 = arith.constant 0 : index
    %c0_5 = arith.constant 0 : index
    %11 = vector.load %arg1[%c0_3, %c0_4, %c0_5] : memref<2x32x32xf32, #tpu.memory_space<vmem>>, vector<1x32x32xf32>
    %12 = vector.shape_cast %11 : vector<1x32x32xf32> to vector<32x32xf32>
    %c0_6 = arith.constant 0 : index
    %c0_7 = arith.constant 0 : index
    %13 = vector.load %arg2[%c0_6, %c0_7] : memref<2x32xf32, #tpu.memory_space<vmem>>, vector<1x32xf32>
    %cst_8 = arith.constant dense<0.000000e+00> : vector<2x32xf32>
    %14 = tpu.matmul %10, %12, %cst_8 {dimension_numbers = #tpu.dot_dimension_numbers<[1], [0], [0], [1], [0, 0, 1, 1], [], []>} : vector<2x32xf32>, vector<32x32xf32>, vector<2x32xf32> -> vector<2x32xf32>
    %cst_9 = arith.constant 0.00176776689 : f32
    %15 = vector.broadcast %cst_9 : f32 to vector<2x32xf32>
    %16 = arith.mulf %14, %15 : vector<2x32xf32>
    %cst_10 = arith.constant 0.00999999977 : f32
    %17 = vector.broadcast %cst_10 : f32 to vector<1x32xf32>
    %18 = arith.mulf %13, %17 : vector<1x32xf32>
    %19 = vector.broadcast %18 : vector<1x32xf32> to vector<2x32xf32>
    %20 = arith.addf %16, %19 : vector<2x32xf32>
    %cst_11 = arith.constant 2.000000e-01 : f32
    %21 = vector.broadcast %cst_11 : f32 to vector<2x32xf32>
    %22 = arith.mulf %21, %20 : vector<2x32xf32>
    %23 = arith.maximumf %20, %22 : vector<2x32xf32>
    %cst_12 = arith.constant 1.41421354 : f32
    %24 = vector.broadcast %cst_12 : f32 to vector<2x32xf32>
    %25 = arith.mulf %23, %24 : vector<2x32xf32>
    %c1 = arith.constant 1 : index
    %c0_13 = arith.constant 0 : index
    %c0_14 = arith.constant 0 : index
    %26 = vector.load %arg1[%c1, %c0_13, %c0_14] : memref<2x32x32xf32, #tpu.memory_space<vmem>>, vector<1x32x32xf32>
    %27 = vector.shape_cast %26 : vector<1x32x32xf32> to vector<32x32xf32>
    %c1_15 = arith.constant 1 : index
    %c0_16 = arith.constant 0 : index
    %28 = vector.load %arg2[%c1_15, %c0_16] : memref<2x32xf32, #tpu.memory_space<vmem>>, vector<1x32xf32>
    %cst_17 = arith.constant dense<0.000000e+00> : vector<2x32xf32>
    %29 = tpu.matmul %25, %27, %cst_17 {dimension_numbers = #tpu.dot_dimension_numbers<[1], [0], [0], [1], [0, 0, 1, 1], [], []>} : vector<2x32xf32>, vector<32x32xf32>, vector<2x32xf32> -> vector<2x32xf32>
    %cst_18 = arith.constant 0.00176776689 : f32
    %30 = vector.broadcast %cst_18 : f32 to vector<2x32xf32>
    %31 = arith.mulf %29, %30 : vector<2x32xf32>
    %cst_19 = arith.constant 0.00999999977 : f32
    %32 = vector.broadcast %cst_19 : f32 to vector<1x32xf32>
    %33 = arith.mulf %28, %32 : vector<1x32xf32>
    %34 = vector.broadcast %33 : vector<1x32xf32> to vector<2x32xf32>
    %35 = arith.addf %31, %34 : vector<2x32xf32>
    %cst_20 = arith.constant 2.000000e-01 : f32
    %36 = vector.broadcast %cst_20 : f32 to vector<2x32xf32>
    %37 = arith.mulf %36, %35 : vector<2x32xf32>
    %38 = arith.maximumf %35, %37 : vector<2x32xf32>
    %cst_21 = arith.constant 1.41421354 : f32
    %39 = vector.broadcast %cst_21 : f32 to vector<2x32xf32>
    %40 = arith.mulf %38, %39 : vector<2x32xf32>
    %c0_22 = arith.constant 0 : index
    %c0_23 = arith.constant 0 : index
    %41 = vector.load %arg3[%c0_22, %c0_23] : memref<2x32xf32, #tpu.memory_space<vmem>>, vector<2x32xf32>
    tpu.vector_store %arg3[%c0_22, %c0_23], %40 {strides = array<i32>} : memref<2x32xf32, #tpu.memory_space<vmem>>, vector<2x32xf32>,
    return
  }
}

</mosaic_0001>

<llo_original>
// kernel: tpu_custom_call.1
$region0: #{tpu_custom_call.1}
  #allocation0 [shape = 'u32[]', space=smem, size = 0x4, offset = 0x4, fixed_abs, tag = 'smem constant byte address 0x4 - core index']
  #allocation1 [shape = 'u32[144,128]{1,0:T(1,128)}', space=vmem, size = 0x12000, scoped, tag = 'internal scratch']
  %s0 = inlined_call_operand.hbm [shape: f32[2,32], index: 0, kind: input, shape index: {}]
  %s1 = inlined_call_operand.hbm [shape: f32[2,32,32], index: 1, kind: input, shape index: {}]
  %s2 = inlined_call_operand.vmem [shape: f32[2,32], index: 2, kind: input, shape index: {}]
  %s3 = inlined_call_operand.hbm [shape: f32[2,32], index: 3, kind: output, shape index: {}]
  %s4 = sld [smem:[#allocation0]]
  $region30: #{tpu_custom_call.1} parent=0
    _
  %s6 = ssub.s32 1, %s4
  %s7 = scalar_select 0, %s6, %s4
  $region1: #{tpu_custom_call.1} parent=0
    #allocation2 [shape = 'u8[1024]{0}', space=vmem, size = 0x400, scoped, tag = 'input window, operand 0, single buffered']
    #allocation3 [shape = 's32[1]{0}', space=sflag, size = 0x4, scoped, tag = 'scoped memory for tpu_custom_call.1']
    #allocation4 [shape = 's32[1]{0}', space=sflag, size = 0x4, scoped, tag = 'scoped memory for tpu_custom_call.1']
    #allocation5 [shape = 'u8[32768]{0}', space=vmem, size = 0x8000, scoped, tag = 'input window, operand 1, single buffered']
    #allocation6 [shape = 's32[1]{0}', space=sflag, size = 0x4, scoped, tag = 'scoped memory for tpu_custom_call.1']
    #allocation7 [shape = 'u8[1024]{0}', space=vmem, size = 0x400, scoped, tag = 'output window, operand 0, single buffered']
    %8 = vsyncpa [#allocation3], 0
    %9 = vsyncpa [#allocation6], 0
    %10 = vsyncpa [#allocation4], 0
    // Predicated region
    $region2: #{tpu_custom_call.1} parent=1 // pred_check
      _
    $region3: #{tpu_custom_call.1} parent=1 // pred_check_branch
      %12 = sbr.rel (0) target = $region5
    $region4: #{tpu_custom_call.1} parent=1 // pred_region
      %s14 = ssub.s32 32, 32
      %15 = vsyncadd [#allocation3], %s14
      %s17 = sshll.u32 [#allocation2], 4
      %s18 = int_to_ptr.vmem [resolvable:$true] %s17
      %20 = dma.hbm_to_vmem [thread:$0]  %s0, 32, %s18, [#allocation3]
    $region5: #{tpu_custom_call.1} parent=1 // pred_fallthru
      _
    // Predicated region
    $region6: #{tpu_custom_call.1} parent=1 // pred_check
      _
    $region7: #{tpu_custom_call.1} parent=1 // pred_check_branch
      %22 = sbr.rel (0) target = $region9
    $region8: #{tpu_custom_call.1} parent=1 // pred_region
      %s24 = ssub.s32 1024, 1024
      %25 = vsyncadd [#allocation6], %s24
      %s26 = sshll.u32 [#allocation5], 4
      %s27 = int_to_ptr.vmem [resolvable:$true] %s26
      %32 = dma.hbm_to_vmem [thread:$0]  %s1, 1024, %s27, [#allocation6], 128, 128, 8
    $region9: #{tpu_custom_call.1} parent=1 // pred_fallthru
      _
    // Predicated region
    $region10: #{tpu_custom_call.1} parent=1 // pred_check
      _
    $region11: #{tpu_custom_call.1} parent=1 // pred_check_branch
      %34 = sbr.rel (0) target = $region13
    $region12: #{tpu_custom_call.1} parent=1 // pred_region
      _
    $region13: #{tpu_custom_call.1} parent=1 // pred_fallthru
      _
    // Predicated region
    $region14: #{tpu_custom_call.1} parent=1 // pred_check
      _
    $region15: #{tpu_custom_call.1} parent=1 // pred_check_branch
      %36 = sbr.rel (0) target = $region17
    $region16: #{tpu_custom_call.1} parent=1 // pred_region
      %37 = dma.done [#allocation3], 32
    $region17: #{tpu_custom_call.1} parent=1 // pred_fallthru
      _
    // Predicated region
    $region18: #{tpu_custom_call.1} parent=1 // pred_check
      _
    $region19: #{tpu_custom_call.1} parent=1 // pred_check_branch
      %39 = sbr.rel (0) target = $region21
    $region20: #{tpu_custom_call.1} parent=1 // pred_region
      %40 = dma.done [#allocation6], 1024
    $region21: #{tpu_custom_call.1} parent=1 // pred_fallthru
      _
    %v41 = vld [vmem:[#allocation2] sm:$0x3]
    %v42 = vmul.f32 %v41, %v41
    %vm43 = vcmask 254976
    %v44 = vsel %vm43, %v42, 0.0
    %45 = vadd.xlane.f32.xlu0 %v44
    %v46 = vpop.xlane.xlu0 %45
    %v47 = vrcp.pop 32.0
    %v48 = vmul.f32 %v46, %v47
    %v49 = vadd.f32 %v48, 1e-08
    %v50 = vrsqrt.pop %v49
    %v51 = vmul.f32 %v41, %v50
    %v52 = vld [vmem:[#allocation5] sm:$0xff]
    %v53 = vld [vmem:[#allocation5 + $0x8] sm:$0xff]
    %v54 = vld [vmem:[#allocation5 + $0x10] sm:$0xff]
    %v55 = vld [vmem:[#allocation5 + $0x18] sm:$0xff]
    %v56 = vld [vmem:[%s2] sm:$0x1]
    %vm57 = vcmask 261120
    %v59 = vsel %vm57, %v51, 0
    %61 = vmatprep.subr.mxu0 0.0
    %62 = vmatpush1.msra.mxu0 %v52
    %63 = vmatprep.subr.mxu0 0.0
    %64 = vmatpush1.msra.mxu0 %v53
    %65 = vmatprep.subr.mxu0 0.0
    %66 = vmatpush1.msra.mxu0 %v54
    %67 = vmatprep.subr.mxu0 0.0
    %68 = vmatpush1.msra.mxu0 %v55
    %69 = vmatprep.subr.mxu0 0.0
    %70 = vmatpush1.msra.mxu0 0.0
    %71 = vmatprep.subr.mxu0 0.0
    %72 = vmatpush1.msra.mxu0 0.0
    %73 = vmatprep.subr.mxu0 0.0
    %74 = vmatpush1.msra.mxu0 0.0
    %75 = vmatprep.subr.mxu0 0.0
    %76 = vmatpush1.msra.mxu0 0.0
    %77 = vmatprep.subr.mxu0 0.0
    %78 = vmatpush1.msra.mxu0 0.0
    %79 = vmatprep.subr.mxu0 0.0
    %80 = vmatpush1.msra.mxu0 0.0
    %81 = vmatprep.subr.mxu0 0.0
    %82 = vmatpush1.msra.mxu0 0.0
    %83 = vmatprep.subr.mxu0 0.0
    %84 = vmatpush1.msra.mxu0 0.0
    %85 = vmatprep.subr.mxu0 0.0
    %86 = vmatpush1.msra.mxu0 0.0
    %87 = vmatprep.subr.mxu0 0.0
    %88 = vmatpush1.msra.mxu0 0.0
    %89 = vmatprep.subr.mxu0 0.0
    %90 = vmatpush1.msra.mxu0 0.0
    %91 = vmatprep.subr.mxu0 0.0
    %92 = vmatpush1.msra.mxu0 0.0
    %93 = vmatprep.subr.mxu0 0.0
    %94 = vmatpush1.msra.mxu0 0.0
    %95 = vmatprep.subr.mxu0 0.0
    %96 = vmatpush1.msra.mxu0 0.0
    %97 = vmatprep.subr.mxu0 0.0
    %98 = vmatpush1.msra.mxu0 0.0
    %99 = vmatprep.subr.mxu0 0.0
    %100 = vmatpush1.msra.mxu0 0.0
    %101 = vmatprep.subr.mxu0 0.0
    %102 = vmatpush1.msra.mxu0 0.0
    %103 = vmatprep.subr.mxu0 0.0
    %104 = vmatpush1.msra.mxu0 0.0
    %105 = vmatprep.subr.mxu0 0.0
    %106 = vmatpush1.msra.mxu0 0.0
    %107 = vmatprep.subr.mxu0 0.0
    %108 = vmatpush1.msra.mxu0 0.0
    %109 = vmatprep.subr.mxu0 0.0
    %110 = vmatpush1.msra.mxu0 0.0
    %111 = vmatprep.subr.mxu0 0.0
    %112 = vmatpush1.msra.mxu0 0.0
    %113 = vmatprep.subr.mxu0 0.0
    %114 = vmatpush1.msra.mxu0 0.0
    %115 = vmatprep.subr.mxu0 0.0
    %116 = vmatpush1.msra.mxu0 0.0
    %117 = vmatprep.subr.mxu0 0.0
    %118 = vmatpush1.msra.mxu0 0.0
    %119 = vmatprep.subr.mxu0 0.0
    %120 = vmatpush1.msra.mxu0 0.0
    %121 = vmatprep.subr.mxu0 0.0
    %122 = vmatpush1.msra.mxu0 0.0
    %123 = vmatprep.subr.mxu0 0.0
    %124 = vmatpush1.msra.mxu0 0.0
    %125 = vmatprep.mubr.f32.mxu0 0.0
    %126 = vmatmul.mubr.f32.gmra.mrb[0].mxu0 %v59
    %v127 = vpop.f32.mrb[0].mxu0
    %v128 = vadd.f32 0.0, %v127
    %v129 = vpop.f32.mrb[0].mxu0
    %130 = vdwg.mxu0
    %v131 = vmul.f32 %v128, 0.0017677669
    %v132 = vmul.f32 %v56, 0.01
    %v133 = vlaneseq
    %v134 = vshrl.u32 %v133, 7
    %v135 = vsub.s32 0, %v134
    %v136 = vrot.slane %v132, %v135
    %v137 = vadd.f32 %v131, %v136
    %v138 = vmul.f32 %v137, 0.2
    %v139 = vmax.f32 %v137, %v138
    %v140 = vmul.f32 %v139, 1.4142135
    %s141 = scalar_lea.vmem [#allocation5], 32
    %v142 = vld [vmem:[%s141] sm:$0xff]
    %v143 = vld [vmem:[%s141 + $0x8] sm:$0xff]
    %v144 = vld [vmem:[%s141 + $0x10] sm:$0xff]
    %v145 = vld [vmem:[%s141 + $0x18] sm:$0xff]
    %v146 = vld [vmem:[%s2 + $0x1] sm:$0x1]
    %v148 = vsel %vm57, %v140, 0
    %150 = vmatprep.subr.mxu0 0.0
    %151 = vmatpush1.msra.mxu0 %v142
    %152 = vmatprep.subr.mxu0 0.0
    %153 = vmatpush1.msra.mxu0 %v143
    %154 = vmatprep.subr.mxu0 0.0
    %155 = vmatpush1.msra.mxu0 %v144
    %156 = vmatprep.subr.mxu0 0.0
    %157 = vmatpush1.msra.mxu0 %v145
    %158 = vmatprep.subr.mxu0 0.0
    %159 = vmatpush1.msra.mxu0 0.0
    %160 = vmatprep.subr.mxu0 0.0
    %161 = vmatpush1.msra.mxu0 0.0
    %162 = vmatprep.subr.mxu0 0.0
    %163 = vmatpush1.msra.mxu0 0.0
    %164 = vmatprep.subr.mxu0 0.0
    %165 = vmatpush1.msra.mxu0 0.0
    %166 = vmatprep.subr.mxu0 0.0
    %167 = vmatpush1.msra.mxu0 0.0
    %168 = vmatprep.subr.mxu0 0.0
    %169 = vmatpush1.msra.mxu0 0.0
    %170 = vmatprep.subr.mxu0 0.0
    %171 = vmatpush1.msra.mxu0 0.0
    %172 = vmatprep.subr.mxu0 0.0
    %173 = vmatpush1.msra.mxu0 0.0
    %174 = vmatprep.subr.mxu0 0.0
    %175 = vmatpush1.msra.mxu0 0.0
    %176 = vmatprep.subr.mxu0 0.0
    %177 = vmatpush1.msra.mxu0 0.0
    %178 = vmatprep.subr.mxu0 0.0
    %179 = vmatpush1.msra.mxu0 0.0
    %180 = vmatprep.subr.mxu0 0.0
    %181 = vmatpush1.msra.mxu0 0.0
    %182 = vmatprep.subr.mxu0 0.0
    %183 = vmatpush1.msra.mxu0 0.0
    %184 = vmatprep.subr.mxu0 0.0
    %185 = vmatpush1.msra.mxu0 0.0
    %186 = vmatprep.subr.mxu0 0.0
    %187 = vmatpush1.msra.mxu0 0.0
    %188 = vmatprep.subr.mxu0 0.0
    %189 = vmatpush1.msra.mxu0 0.0
    %190 = vmatprep.subr.mxu0 0.0
    %191 = vmatpush1.msra.mxu0 0.0
    %192 = vmatprep.subr.mxu0 0.0
    %193 = vmatpush1.msra.mxu0 0.0
    %194 = vmatprep.subr.mxu0 0.0
    %195 = vmatpush1.msra.mxu0 0.0
    %196 = vmatprep.subr.mxu0 0.0
    %197 = vmatpush1.msra.mxu0 0.0
    %198 = vmatprep.subr.mxu0 0.0
    %199 = vmatpush1.msra.mxu0 0.0
    %200 = vmatprep.subr.mxu0 0.0
    %201 = vmatpush1.msra.mxu0 0.0
    %202 = vmatprep.subr.mxu0 0.0
    %203 = vmatpush1.msra.mxu0 0.0
    %204 = vmatprep.subr.mxu0 0.0
    %205 = vmatpush1.msra.mxu0 0.0
    %206 = vmatprep.subr.mxu0 0.0
    %207 = vmatpush1.msra.mxu0 0.0
    %208 = vmatprep.subr.mxu0 0.0
    %209 = vmatpush1.msra.mxu0 0.0
    %210 = vmatprep.subr.mxu0 0.0
    %211 = vmatpush1.msra.mxu0 0.0
    %212 = vmatprep.subr.mxu0 0.0
    %213 = vmatpush1.msra.mxu0 0.0
    %214 = vmatprep.mubr.f32.mxu0 0.0
    %215 = vmatmul.mubr.f32.gmra.mrb[0].mxu0 %v148
    %v216 = vpop.f32.mrb[0].mxu0
    %v217 = vadd.f32 0.0, %v216
    %v218 = vpop.f32.mrb[0].mxu0
    %219 = vdwg.mxu0
    %v220 = vmul.f32 %v217, 0.0017677669
    %v221 = vmul.f32 %v146, 0.01
    %v222 = vlaneseq
    %v223 = vshrl.u32 %v222, 7
    %v224 = vsub.s32 0, %v223
    %v225 = vrot.slane %v221, %v224
    %v226 = vadd.f32 %v220, %v225
    %v227 = vmul.f32 %v226, 0.2
    %v228 = vmax.f32 %v226, %v227
    %v229 = vmul.f32 %v228, 1.4142135
    %230 = vst.msk [vmem:[#allocation7] sm:$0x3] %vm43, %v229
    // Predicated region
    $region22: #{tpu_custom_call.1} parent=1 // pred_check
      _
    $region23: #{tpu_custom_call.1} parent=1 // pred_check_branch
      %232 = sbr.rel (0) target = $region25
    $region24: #{tpu_custom_call.1} parent=1 // pred_region
      %s234 = ssub.s32 32, 32
      %235 = vsyncadd [#allocation4], %s234
      %s237 = sshll.u32 [#allocation7], 4
      %s238 = int_to_ptr.vmem [resolvable:$true] %s237
      %240 = dma.vmem_to_hbm [thread:$0]  %s238, 32, %s3, [#allocation4]
    $region25: #{tpu_custom_call.1} parent=1 // pred_fallthru
      _
    // Predicated region
    $region26: #{tpu_custom_call.1} parent=1 // pred_check
      _
    $region27: #{tpu_custom_call.1} parent=1 // pred_check_branch
      %242 = sbr.rel (0) target = $region29
    $region28: #{tpu_custom_call.1} parent=1 // pred_region
      %243 = dma.done [#allocation4], 32
    $region29: #{tpu_custom_call.1} parent=1 // pred_fallthru
      _
    %244 = vsyncpa [#allocation3], 1
    %245 = vsyncpa [#allocation6], 1
    %246 = vsyncpa [#allocation4], 1

</llo_original>
